<compile_context>
chip_gen: v7x
topology: tpu7x:2x2x1
jax: 0.10.0
libtpu: 0.0.40
codegen_flags: <defaults>
</compile_context>

<pallas_src>
import functools

import jax
import jax.numpy as jnp
import numpy as np
from jax.experimental import pallas as pl
from jax.experimental.pallas import tpu as pltpu


def _round_up(x, m):
    return ((x + m - 1) // m) * m


# ----------------------------------------------------------------------------
# Fused encoder+decoder kernel.
#   grid g in [0, g_enc)          : z += x[:, g-th K tile] @ W_enc[g-th K tile]
#   grid g in [g_enc, g_enc+g_dec): out[:, (g-g_enc)-th N tile] = z @ W_dec tile
# z stays resident in a VMEM f32 scratch across the whole grid.
# ----------------------------------------------------------------------------
def _fused_kernel(x_ref, we_ref, wd_ref, o_ref, z_ref, *, g_enc):
    g = pl.program_id(0)

    @pl.when(g == 0)
    def _():
        z_ref[...] = jnp.zeros_like(z_ref)

    @pl.when(g < g_enc)
    def _():
        z_ref[...] += jnp.dot(x_ref[...], we_ref[...],
                              preferred_element_type=jnp.float32)

    @pl.when(g >= g_enc)
    def _():
        o_ref[...] = jnp.dot(z_ref[...].astype(wd_ref.dtype), wd_ref[...],
                             preferred_element_type=jnp.float32
                             ).astype(o_ref.dtype)


def linear_forward_pallas(x, w_enc_p, w_dec_p, *, tk, tn):
    """x:(B,n,3); w_enc_p:(Kp,Hp), w_dec_p:(Hp,Np) pre-padded compute-dtype."""
    B, n, _ = x.shape
    Kp, Hp = w_enc_p.shape
    Hp2, Np = w_dec_p.shape
    assert Hp == Hp2 and Kp % tk == 0 and Np % tn == 0 and Hp % 128 == 0
    assert 3 * n <= Kp and 3 * n <= Np
    compute_dtype = w_enc_p.dtype

    # bf16 packs (16,128) per vreg -> round M tile to 16 rows (8 for f32).
    m_quant = 16 if jnp.dtype(compute_dtype).itemsize == 2 else 8
    Mp = max(_round_up(B, m_quant), m_quant)

    x_flat = x.reshape(B, 3 * n).astype(compute_dtype)
    x_p = jnp.pad(x_flat, ((0, Mp - B), (0, Kp - 3 * n)))

    g_enc = Kp // tk
    g_dec = Np // tn

    out = pl.pallas_call(
        functools.partial(_fused_kernel, g_enc=g_enc),
        out_shape=jax.ShapeDtypeStruct((Mp, Np), x.dtype),
        grid_spec=pltpu.PrefetchScalarGridSpec(
            num_scalar_prefetch=0,
            grid=(g_enc + g_dec,),
            in_specs=[
                # x: stream K tiles during encoder phase, then park (no refetch)
                pl.BlockSpec((Mp, tk), lambda g: (0, jnp.minimum(g, g_enc - 1))),
                # W_enc: stream (tk, Hp) tiles during encoder phase, then park
                pl.BlockSpec((tk, Hp), lambda g: (jnp.minimum(g, g_enc - 1), 0)),
                # W_dec: parked at tile 0 during encoder, stream N tiles after
                pl.BlockSpec((Hp, tn), lambda g: (0, jnp.maximum(g - g_enc, 0))),
            ],
            out_specs=pl.BlockSpec((Mp, tn),
                                   lambda g: (0, jnp.maximum(g - g_enc, 0))),
            scratch_shapes=[pltpu.VMEM((Mp, Hp), jnp.float32)],
        ),
        compiler_params=pltpu.CompilerParams(
            dimension_semantics=("arbitrary",)),
    )(x_p, w_enc_p, w_dec_p)
    return out[:B, :3 * n].reshape(B, n, 3)


def linear_forward_xla(x, w_enc, w_dec):
    """Tiny-shape fallback: fused XLA dots on the folded f32 weights."""
    B, n, _ = x.shape
    hp = jax.lax.Precision.HIGHEST
    x_flat = x.reshape(B, 3 * n)
    z = jnp.dot(x_flat, w_enc, precision=hp, preferred_element_type=jnp.float32)
    out = jnp.dot(z, w_dec, precision=hp, preferred_element_type=jnp.float32)
    return out.reshape(B, n, 3).astype(x.dtype)


_PALLAS_MIN_WEIGHT_ELEMS = 1 << 17   # below this, padding/launch overhead wins


def linear_forward(x, w_enc, w_dec, w_enc_p, w_dec_p, *, tk, tn,
                   force_pallas=None):
    use_pallas = force_pallas
    if use_pallas is None:
        use_pallas = (w_enc.size + w_dec.size) >= _PALLAS_MIN_WEIGHT_ELEMS
    if use_pallas:
        return linear_forward_pallas(x, w_enc_p, w_dec_p, tk=tk, tn=tn)
    return linear_forward_xla(x, w_enc, w_dec)


# ----------------------------------------------------------------------------
# One-time weight preparation (hoisted out of the forward path).
# Flat index convention matches torch.flatten(start_dim=1): 3*vertex + channel.
# ----------------------------------------------------------------------------
def fold_weights(phi, w_ld, w_lu, blend):
    """W_enc = w0*(phi kron I3) + (1-w0)*ld.T ; W_dec = w1*(phi kron I3).T + (1-w1)*lu.T."""
    n, k = phi.shape
    w0 = blend[0, 0].astype(jnp.float32)
    w1 = blend[1, 0].astype(jnp.float32)
    phi32 = phi.astype(jnp.float32)
    eye3 = jnp.eye(3, dtype=jnp.float32)

    # W_enc[3i+c, 3q+d] = w0*phi[i,q]*delta(c,d) + (1-w0)*ld.T[3i+c, 3q+d]
    ld_t4 = w_ld.astype(jnp.float32).T.reshape(n, 3, k, 3)
    w_enc = ((1.0 - w0) * ld_t4
             + w0 * phi32[:, None, :, None] * eye3[None, :, None, :]
             ).reshape(3 * n, 3 * k)

    # W_dec[3q+d, 3i+c] = w1*phi[i,q]*delta(d,c) + (1-w1)*lu.T[3q+d, 3i+c]
    lu_t4 = w_lu.astype(jnp.float32).T.reshape(k, 3, n, 3)
    w_dec = ((1.0 - w1) * lu_t4
             + w1 * phi32.T[:, None, :, None] * eye3[None, :, None, :]
             ).reshape(3 * k, 3 * n)
    return w_enc, w_dec


def pad_weights_for_pallas(w_enc, w_dec, *, compute_dtype=jnp.bfloat16,
                           tk=512, tn=512):
    """Cast + zero-pad the folded weights to tile multiples, once."""
    K1, H = w_enc.shape
    H2, N2 = w_dec.shape
    assert H == H2
    tk = min(tk, _round_up(K1, 128))
    tn = min(tn, _round_up(N2, 128))
    assert tk % 128 == 0 and tn % 128 == 0
    Kp = _round_up(K1, tk)
    Hp = _round_up(H, 128)
    Np = _round_up(N2, tn)
    w_enc_p = jnp.pad(w_enc, ((0, Kp - K1), (0, Hp - H))).astype(compute_dtype)
    w_dec_p = jnp.pad(w_dec, ((0, Hp - H), (0, Np - N2))).astype(compute_dtype)
    return w_enc_p, w_dec_p, tk, tn


# ----------------------------------------------------------------------------
# References for verification.
# ----------------------------------------------------------------------------
def reference_forward(x, phi, w_ld, w_lu, blend):
    """Pure-JAX f32 transcription of the PyTorch module."""
    B, n, _ = x.shape
    k = phi.shape[1]
    w0, w1 = blend[0, 0], blend[1, 0]
    hp = jax.lax.Precision.HIGHEST
    y = jnp.einsum("nq,bnc->bqc", phi, x, precision=hp).reshape(B, 3 * k)
    x_flat = x.reshape(B, 3 * n)
    z = w0 * y + (1.0 - w0) * jnp.matmul(x_flat, w_ld.T, precision=hp)
    y2 = jnp.einsum("nq,bqc->bnc", phi, z.reshape(B, k, 3), precision=hp)
    xl = jnp.matmul(z, w_lu.T, precision=hp).reshape(B, n, 3)
    return w1 * y2 + (1.0 - w1) * xl


def matched_reference(x, w_enc, w_dec, compute_dtype):
    """Same math as the fused kernel path (incl. bf16 quantization of x, W, z)."""
    B, n, _ = x.shape
    hp = jax.lax.Precision.HIGHEST
    we = w_enc.astype(compute_dtype).astype(jnp.float32)
    wd = w_dec.astype(compute_dtype).astype(jnp.float32)
    xq = x.reshape(B, 3 * n).astype(compute_dtype).astype(jnp.float32)
    z = jnp.matmul(xq, we, precision=hp)
    zq = z.astype(compute_dtype).astype(jnp.float32)
    out = jnp.matmul(zq, wd, precision=hp)
    return out.reshape(B, n, 3)


if __name__ == "__main__":
    # --- Test 1: module-consistent small shapes (B=2, n=16 vertices, k=8) ----
    B, n, k = 2, 16, 8
    prior_coef = 0.3

    key = jax.random.PRNGKey(0)
    k_eig, k_ld, k_lu, k_x, k2_eig, k2_ld, k2_lu, k2_x = jax.random.split(key, 8)

    eig_vecs = jax.random.normal(k_eig, (n, n), jnp.float32)
    phi = eig_vecs[:, :k]                                               # frozen spectral basis
    w_ld = jax.random.normal(k_ld, (3 * k, 3 * n), jnp.float32) * 0.1   # nn.Linear(3n,3k,False)
    w_lu = jax.random.normal(k_lu, (3 * n, 3 * k), jnp.float32) * 0.1   # nn.Linear(3k,3n,False)
    blend = jnp.full((2, 1), prior_coef, jnp.float32)                   # self.weights
    x = jax.random.normal(k_x, (B, n, 3), jnp.float32)

    # One-time prep (per weight update), NOT in the forward path.
    w_enc, w_dec = fold_weights(phi, w_ld, w_lu, blend)
    w_enc_p, w_dec_p, tk, tn = pad_weights_for_pallas(
        w_enc, w_dec, compute_dtype=jnp.bfloat16, tk=512, tn=512)

    fwd_pallas = jax.jit(functools.partial(linear_forward, tk=tk, tn=tn,
                                           force_pallas=True))
    out = jax.block_until_ready(fwd_pallas(x, w_enc, w_dec, w_enc_p, w_dec_p))

    ref_matched = matched_reference(x, w_enc, w_dec, jnp.bfloat16)
    ref_f32 = reference_forward(x, phi, w_ld, w_lu, blend)
    np.testing.assert_allclose(np.asarray(out), np.asarray(ref_matched),
                               rtol=5e-3, atol=5e-3)
    np.testing.assert_allclose(np.asarray(out), np.asarray(ref_f32),
                               rtol=5e-2, atol=5e-2)

    # Auto-dispatch at these tiny shapes falls back to the fused XLA dot path.
    fwd_auto = jax.jit(functools.partial(linear_forward, tk=tk, tn=tn))
    out_auto = jax.block_until_ready(fwd_auto(x, w_enc, w_dec, w_enc_p, w_dec_p))
    np.testing.assert_allclose(np.asarray(out_auto), np.asarray(ref_f32),
                               rtol=1e-4, atol=1e-4)

    # --- Test 2: multi-tile grid (both phases take several steps) ------------
    B2, n2, k2 = 4, 96, 16
    eig2 = jax.random.normal(k2_eig, (n2, n2), jnp.float32)
    phi2 = eig2[:, :k2]
    w_ld2 = jax.random.normal(k2_ld, (3 * k2, 3 * n2), jnp.float32) * 0.1
    w_lu2 = jax.random.normal(k2_lu, (3 * n2, 3 * k2), jnp.float32) * 0.1
    x2 = jax.random.normal(k2_x, (B2, n2, 3), jnp.float32)

    w_enc2, w_dec2 = fold_weights(phi2, w_ld2, w_lu2, blend)
    w_enc2_p, w_dec2_p, tk2, tn2 = pad_weights_for_pallas(
        w_enc2, w_dec2, compute_dtype=jnp.bfloat16, tk=128, tn=128)
    fwd2 = jax.jit(functools.partial(linear_forward, tk=tk2, tn=tn2,
                                     force_pallas=True))
    out2 = jax.block_until_ready(fwd2(x2, w_enc2, w_dec2, w_enc2_p, w_dec2_p))
    ref2 = matched_reference(x2, w_enc2, w_dec2, jnp.bfloat16)
    np.testing.assert_allclose(np.asarray(out2), np.asarray(ref2),
                               rtol=5e-3, atol=2e-2)

    print("KERNEL_OK")
</pallas_src>

<mosaic_0001>
module attributes {stable_mosaic.version = 11 : i64} {
  func.func @_fused_kernel(%arg0: i32, %arg1: memref<16x128xbf16, #tpu.memory_space<vmem>>, %arg2: memref<128x128xbf16, #tpu.memory_space<vmem>>, %arg3: memref<128x128xbf16, #tpu.memory_space<vmem>>, %arg4: memref<16x128xf32, #tpu.memory_space<vmem>>, %arg5: memref<16x128xf32, #tpu.memory_space<vmem>>) attributes {dimension_semantics = [#tpu.dimension_semantics<arbitrary>], iteration_bounds = array<i64: 2>, scalar_prefetch = 0 : i64, scratch_operands = 1 : i64, tpu.core_type = #tpu.core_type<tc>, window_params = [{transform_indices = @transform_0, window_bounds = array<i64: 16, 128>}, {transform_indices = @transform_1, window_bounds = array<i64: 128, 128>}, {transform_indices = @transform_2, window_bounds = array<i64: 128, 128>}, {transform_indices = @transform_3, window_bounds = array<i64: 16, 128>}]} {
    %c0_i32 = arith.constant 0 : i32
    %0 = arith.cmpi eq, %arg0, %c0_i32 : i32
    %1 = arith.extui %0 : i1 to i32
    %c0_i32_0 = arith.constant 0 : i32
    %2 = arith.cmpi ne, %1, %c0_i32_0 : i32
    scf.if %2 {
      %cst = arith.constant 0.000000e+00 : f32
      %9 = vector.broadcast %cst : f32 to vector<16x128xf32>
      %c0 = arith.constant 0 : index
      %c0_4 = arith.constant 0 : index
      %10 = vector.load %arg5[%c0, %c0_4] : memref<16x128xf32, #tpu.memory_space<vmem>>, vector<16x128xf32>
      tpu.vector_store %arg5[%c0, %c0_4], %9 {strides = array<i32>} : memref<16x128xf32, #tpu.memory_space<vmem>>, vector<16x128xf32>,
    } else {
    }
    %c1_i32 = arith.constant 1 : i32
    %3 = arith.cmpi slt, %arg0, %c1_i32 : i32
    %4 = arith.extui %3 : i1 to i32
    %c0_i32_1 = arith.constant 0 : i32
    %5 = arith.cmpi ne, %4, %c0_i32_1 : i32
    scf.if %5 {
      %c0 = arith.constant 0 : index
      %c0_4 = arith.constant 0 : index
      %9 = vector.load %arg5[%c0, %c0_4] : memref<16x128xf32, #tpu.memory_space<vmem>>, vector<16x128xf32>
      %c0_5 = arith.constant 0 : index
      %c0_6 = arith.constant 0 : index
      %10 = vector.load %arg1[%c0_5, %c0_6] : memref<16x128xbf16, #tpu.memory_space<vmem>>, vector<16x128xbf16>
      %c0_7 = arith.constant 0 : index
      %c0_8 = arith.constant 0 : index
      %11 = vector.load %arg2[%c0_7, %c0_8] : memref<128x128xbf16, #tpu.memory_space<vmem>>, vector<128x128xbf16>
      %cst = arith.constant dense<0.000000e+00> : vector<16x128xf32>
      %12 = tpu.matmul %10, %11, %cst {dimension_numbers = #tpu.dot_dimension_numbers<[1], [0], [0], [1], [0, 0, 1, 1], [], []>} : vector<16x128xbf16>, vector<128x128xbf16>, vector<16x128xf32> -> vector<16x128xf32>
      %13 = arith.addf %9, %12 : vector<16x128xf32>
      %c0_9 = arith.constant 0 : index
      %c0_10 = arith.constant 0 : index
      %14 = vector.load %arg5[%c0_9, %c0_10] : memref<16x128xf32, #tpu.memory_space<vmem>>, vector<16x128xf32>
      tpu.vector_store %arg5[%c0_9, %c0_10], %13 {strides = array<i32>} : memref<16x128xf32, #tpu.memory_space<vmem>>, vector<16x128xf32>,
    } else {
    }
    %c1_i32_2 = arith.constant 1 : i32
    %6 = arith.cmpi sge, %arg0, %c1_i32_2 : i32
    %7 = arith.extui %6 : i1 to i32
    %c0_i32_3 = arith.constant 0 : i32
    %8 = arith.cmpi ne, %7, %c0_i32_3 : i32
    scf.if %8 {
      %c0 = arith.constant 0 : index
      %c0_4 = arith.constant 0 : index
      %9 = vector.load %arg5[%c0, %c0_4] : memref<16x128xf32, #tpu.memory_space<vmem>>, vector<16x128xf32>
      %10 = arith.truncf %9 : vector<16x128xf32> to vector<16x128xbf16>
      %c0_5 = arith.constant 0 : index
      %c0_6 = arith.constant 0 : index
      %11 = vector.load %arg3[%c0_5, %c0_6] : memref<128x128xbf16, #tpu.memory_space<vmem>>, vector<128x128xbf16>
      %cst = arith.constant dense<0.000000e+00> : vector<16x128xf32>
      %12 = tpu.matmul %10, %11, %cst {dimension_numbers = #tpu.dot_dimension_numbers<[1], [0], [0], [1], [0, 0, 1, 1], [], []>} : vector<16x128xbf16>, vector<128x128xbf16>, vector<16x128xf32> -> vector<16x128xf32>
      %c0_7 = arith.constant 0 : index
      %c0_8 = arith.constant 0 : index
      %13 = vector.load %arg4[%c0_7, %c0_8] : memref<16x128xf32, #tpu.memory_space<vmem>>, vector<16x128xf32>
      tpu.vector_store %arg4[%c0_7, %c0_8], %12 {strides = array<i32>} : memref<16x128xf32, #tpu.memory_space<vmem>>, vector<16x128xf32>,
    } else {
    }
    return
  }
  func.func @transform_0(%arg0: i32) -> (i32, i32) {
    %c0_i32 = arith.constant 0 : i32
    %0 = arith.minsi %arg0, %c0_i32 : i32
    %c0_i32_0 = arith.constant 0 : i32
    %c0_i32_1 = arith.constant 0 : i32
    return %c0_i32_0, %0 : i32, i32
  }
  func.func @transform_1(%arg0: i32) -> (i32, i32) {
    %c0_i32 = arith.constant 0 : i32
    %0 = arith.minsi %arg0, %c0_i32 : i32
    %c0_i32_0 = arith.constant 0 : i32
    %c0_i32_1 = arith.constant 0 : i32
    return %0, %c0_i32_0 : i32, i32
  }
  func.func @transform_2(%arg0: i32) -> (i32, i32) {
    %c1_i32 = arith.constant 1 : i32
    %0 = arith.subi %arg0, %c1_i32 : i32
    %c0_i32 = arith.constant 0 : i32
    %1 = arith.maxsi %0, %c0_i32 : i32
    %c0_i32_0 = arith.constant 0 : i32
    %c0_i32_1 = arith.constant 0 : i32
    return %c0_i32_0, %1 : i32, i32
  }
  func.func @transform_3(%arg0: i32) -> (i32, i32) {
    %c1_i32 = arith.constant 1 : i32
    %0 = arith.subi %arg0, %c1_i32 : i32
    %c0_i32 = arith.constant 0 : i32
    %1 = arith.maxsi %0, %c0_i32 : i32
    %c0_i32_0 = arith.constant 0 : i32
    %c0_i32_1 = arith.constant 0 : i32
    return %c0_i32_0, %1 : i32, i32
  }
}

</mosaic_0001>

<llo_original>
// kernel: linear_forward.1
$region0: #{linear_forward.1}
  #allocation0 [shape = 'u32[]', space=smem, size = 0x4, offset = 0x4, fixed_abs, tag = 'smem constant byte address 0x4 - core index']
  #allocation1 [shape = 'u32[144,128]{1,0:T(1,128)}', space=vmem, size = 0x12000, scoped, tag = 'internal scratch']
  #allocation2 [shape = 'f32[16,128]{1,0:T(8,128)}', space=vmem, size = 0x2000, scoped, tag = 'scratch operand']
  %s0 = inlined_call_operand.vmem [shape: bf16[16,128], index: 0, kind: input, shape index: {}]
  %s1 = inlined_call_operand.hbm [shape: bf16[128,128], index: 1, kind: input, shape index: {}]
  %s2 = inlined_call_operand.hbm [shape: bf16[128,128], index: 2, kind: input, shape index: {}]
  %s3 = inlined_call_operand.vmem [shape: f32[16,128], index: 3, kind: output, shape index: {}]
  %s4 = sld [smem:[#allocation0]]
  $region65: #{linear_forward.1} parent=0
    _
  %s6 = ssub.s32 1, %s4
  %s7 = scalar_select 0, %s6, %s4
  $region1: #{linear_forward.1} parent=0
    #allocation3 [shape = 'u8[65536]{0}', space=vmem, size = 0x10000, scoped, tag = 'input window, operand 1']
    #allocation4 [shape = 's32[2]{0}', space=sflag, size = 0x8, scoped, tag = 'scoped memory for linear_forward.1']
    #allocation5 [shape = 'u8[65536]{0}', space=vmem, size = 0x10000, scoped, tag = 'input window, operand 2']
    #allocation6 [shape = 's32[2]{0}', space=sflag, size = 0x8, scoped, tag = 'scoped memory for linear_forward.1']
    %8 = vsyncpa [#allocation4], 0
    %s9 = scalar_lea.sflag [#allocation4], 1
    %10 = vsyncpa %s9, 0
    %11 = vsyncpa [#allocation6], 0
    %s12 = scalar_lea.sflag [#allocation6], 1
    %13 = vsyncpa %s12, 0
    loop: start=0, step=1, limit=4
    $region2: #{linear_forward.1} parent=1 // loop_pre_header
      _
    $region3: #{linear_forward.1} parent=1 // loop_header
      %s15 = sphi 0, %s19
      %p16 = scmp.ge.s32.totalorder %s15, 4
      %s29 = sphi 0, %s31
      %s32 = sphi 0, %s29
      %s33 = sphi 0, %s32
      %s49 = sphi 0, %s33
      %s59 = sphi 0, %s61
      %s62 = sphi 0, %s59
      %s63 = sphi 0, %s62
      %s79 = sphi 0, %s63
      %s91 = sphi 0, %s93
      %s94 = sphi 0, %s91
      %s95 = sphi 0, %s94
      %s111 = sphi 0, %s95
      %s123 = sphi 0, %s125
      %s126 = sphi 0, %s123
      %s127 = sphi 0, %s126
      %s143 = sphi 0, %s127
    $region4: #{linear_forward.1} parent=1 // loop_header_branch
      %18 = sbr.rel (%p16) target = $region8
    $region5: #{linear_forward.1} parent=1 // loop_body
      %s20 = ssub.s32 %s15, 1
      %s21 = ssub.s32 %s15, 2
      %s22 = sadd.s32 %s15, 1
      %p23 = scmp.lt.s32.totalorder %s15, 0
      %s24 = scalar_select %p23, %s15, 0
      %p25 = scmp.lt.s32.totalorder %s22, 0
      %s26 = scalar_select %p25, %s22, 0
      %s27 = ssub.s32 %s24, %s26
      %p28 = scmp.eq.s32.totalorder %s27, 0
      %s30 = sadd.s32 %s29, 1
      %s31 = scalar_select %p28, %s29, %s30
      %p34 = pneg %p28
      %p35 = scmp.eq.s32.totalorder %s15, 1
      %p36 = por %p34, %p35
      %p37 = scmp.ne.s32.totalorder %s29, %s32
      %p38 = scmp.eq.s32.totalorder %s15, 0
      %p39 = por %p37, %p38
      %p40 = scmp.ne.s32.totalorder %s29, %s32
      %p41 = scmp.eq.s32.totalorder %s20, 1
      %p42 = por %p40, %p41
      %p43 = scmp.ne.s32.totalorder %s32, %s33
      %p44 = scmp.eq.s32.totalorder %s20, 0
      %p45 = por %p43, %p44
      %p46 = scmp.ne.s32.totalorder %s32, %s33
      %p47 = scmp.eq.s32.totalorder %s21, 1
      %p48 = por %p46, %p47
      %p50 = scmp.ne.s32.totalorder %s33, %s49
      %p51 = scmp.eq.s32.totalorder %s21, 0
      %p52 = por %p50, %p51
      %p53 = scmp.lt.s32.totalorder %s15, 0
      %s54 = scalar_select %p53, %s15, 0
      %p55 = scmp.lt.s32.totalorder %s22, 0
      %s56 = scalar_select %p55, %s22, 0
      %s57 = ssub.s32 %s54, %s56
      %p58 = scmp.eq.s32.totalorder %s57, 0
      %s60 = sadd.s32 %s59, 1
      %s61 = scalar_select %p58, %s59, %s60
      %p64 = pneg %p58
      %p65 = scmp.eq.s32.totalorder %s15, 1
      %p66 = por %p64, %p65
      %p67 = scmp.ne.s32.totalorder %s59, %s62
      %p68 = scmp.eq.s32.totalorder %s15, 0
      %p69 = por %p67, %p68
      %p70 = scmp.ne.s32.totalorder %s59, %s62
      %p71 = scmp.eq.s32.totalorder %s20, 1
      %p72 = por %p70, %p71
      %p73 = scmp.ne.s32.totalorder %s62, %s63
      %p74 = scmp.eq.s32.totalorder %s20, 0
      %p75 = por %p73, %p74
      %p76 = scmp.ne.s32.totalorder %s62, %s63
      %p77 = scmp.eq.s32.totalorder %s21, 1
      %p78 = por %p76, %p77
      %p80 = scmp.ne.s32.totalorder %s63, %s79
      %p81 = scmp.eq.s32.totalorder %s21, 0
      %p82 = por %p80, %p81
      %s83 = ssub.s32 %s15, 1
      %p84 = scmp.gt.s32.totalorder %s83, 0
      %s85 = scalar_select %p84, %s83, 0
      %s86 = ssub.s32 %s22, 1
      %p87 = scmp.gt.s32.totalorder %s86, 0
      %s88 = scalar_select %p87, %s86, 0
      %s89 = ssub.s32 %s85, %s88
      %p90 = scmp.eq.s32.totalorder %s89, 0
      %s92 = sadd.s32 %s91, 1
      %s93 = scalar_select %p90, %s91, %s92
      %p96 = pneg %p90
      %p97 = scmp.eq.s32.totalorder %s15, 1
      %p98 = por %p96, %p97
      %p99 = scmp.ne.s32.totalorder %s91, %s94
      %p100 = scmp.eq.s32.totalorder %s15, 0
      %p101 = por %p99, %p100
      %p102 = scmp.ne.s32.totalorder %s91, %s94
      %p103 = scmp.eq.s32.totalorder %s20, 1
      %p104 = por %p102, %p103
      %p105 = scmp.ne.s32.totalorder %s94, %s95
      %p106 = scmp.eq.s32.totalorder %s20, 0
      %p107 = por %p105, %p106
      %p108 = scmp.ne.s32.totalorder %s94, %s95
      %p109 = scmp.eq.s32.totalorder %s21, 1
      %p110 = por %p108, %p109
      %p112 = scmp.ne.s32.totalorder %s95, %s111
      %p113 = scmp.eq.s32.totalorder %s21, 0
      %p114 = por %p112, %p113
      %s115 = ssub.s32 %s15, 1
      %p116 = scmp.gt.s32.totalorder %s115, 0
      %s117 = scalar_select %p116, %s115, 0
      %s118 = ssub.s32 %s22, 1
      %p119 = scmp.gt.s32.totalorder %s118, 0
      %s120 = scalar_select %p119, %s118, 0
      %s121 = ssub.s32 %s117, %s120
      %p122 = scmp.eq.s32.totalorder %s121, 0
      %s124 = sadd.s32 %s123, 1
      %s125 = scalar_select %p122, %s123, %s124
      %p128 = pneg %p122
      %p129 = scmp.eq.s32.totalorder %s15, 1
      %p130 = por %p128, %p129
      %p131 = scmp.ne.s32.totalorder %s123, %s126
      %p132 = scmp.eq.s32.totalorder %s15, 0
      %p133 = por %p131, %p132
      %p134 = scmp.ne.s32.totalorder %s123, %s126
      %p135 = scmp.eq.s32.totalorder %s20, 1
      %p136 = por %p134, %p135
      %p137 = scmp.ne.s32.totalorder %s126, %s127
      %p138 = scmp.eq.s32.totalorder %s20, 0
      %p139 = por %p137, %p138
      %p140 = scmp.ne.s32.totalorder %s126, %s127
      %p141 = scmp.eq.s32.totalorder %s21, 1
      %p142 = por %p140, %p141
      %p144 = scmp.ne.s32.totalorder %s127, %s143
      %p145 = scmp.eq.s32.totalorder %s21, 0
      %p146 = por %p144, %p145
      %p147 = scmp.le.s32.totalorder 1, %s15
      %p148 = scmp.lt.s32.totalorder %s15, 3
      %p149 = pnand %p147, %p148
      %p150 = pneg %p149
      // Predicated region
      $region9: #{linear_forward.1} parent=5 // pred_check
        _
      $region10: #{linear_forward.1} parent=5 // pred_check_branch
        %152 = sbr.rel (%p149) target = $region12
      $region11: #{linear_forward.1} parent=5 // pred_region
        %s153 = ssub.s32 %s15, 1
      $region12: #{linear_forward.1} parent=5 // pred_fallthru
        _
      %p154 = scmp.lt.s32.totalorder %s15, 2
      // Predicated region
      $region13: #{linear_forward.1} parent=5 // pred_check
        %p155 = pneg %p154
      $region14: #{linear_forward.1} parent=5 // pred_check_branch
        %157 = sbr.rel (%p155) target = $region16
      $region15: #{linear_forward.1} parent=5 // pred_region
        // Predicated region
        $region17: #{linear_forward.1} parent=15 // pred_check
          %p158 = pneg %p39
        $region18: #{linear_forward.1} parent=15 // pred_check_branch
          %160 = sbr.rel (%p158) target = $region20
        $region19: #{linear_forward.1} parent=15 // pred_region
          %p161 = scmp.lt.s32.totalorder %s15, 0
          %s162 = scalar_select %p161, %s15, 0
          %p163 = scmp.lt.s32.totalorder %s162, 0
          %s164 = scalar_select %p163, %s162, 0
          %s165 = smul.addr %s164, 4
          %s166 = scalar_lea.vmem %s0, %s165
          %p167 = scmp.lt.s32.totalorder %s15, 0
          %s168 = scalar_select %p167, %s15, 0
        $region20: #{linear_forward.1} parent=15 // pred_fallthru
          _
        // Predicated region
        $region21: #{linear_forward.1} parent=15 // pred_check
          %p169 = pneg %p69
        $region22: #{linear_forward.1} parent=15 // pred_check_branch
          %171 = sbr.rel (%p169) target = $region24
        $region23: #{linear_forward.1} parent=15 // pred_region
          %s172 = sand.u32 %s59, 1
          %s173 = scalar_lea.sflag [#allocation4], %s172
          %s174 = sand.u32 %s59, 1
          %s175 = smul.addr %s174, 64
          %s176 = scalar_lea.vmem [#allocation3], %s175
          %p177 = scmp.lt.s32.totalorder %s15, 0
          %s178 = scalar_select %p177, %s15, 0
          %s179 = smul.u32 16, %s178
          %s181 = ssub.s32 1024, 1024
          %182 = vsyncadd %s173, %s181
          %s183 = smul.addr %s179, 64
          %s184 = scalar_lea.hbm %s1, %s183
          %s185 = sshll.u32 %s176, 4
          %s186 = int_to_ptr.vmem [resolvable:$true] %s185
          %191 = dma.hbm_to_vmem [thread:$0]  %s184, 1024, %s186, %s173, 64, 64, 4
        $region24: #{linear_forward.1} parent=15 // pred_fallthru
          _
        // Predicated region
        $region25: #{linear_forward.1} parent=15 // pred_check
          %p192 = pneg %p101
        $region26: #{linear_forward.1} parent=15 // pred_check_branch
          %194 = sbr.rel (%p192) target = $region28
        $region27: #{linear_forward.1} parent=15 // pred_region
          %s195 = sand.u32 %s91, 1
          %s196 = scalar_lea.sflag [#allocation6], %s195
          %s197 = sand.u32 %s91, 1
          %s198 = smul.addr %s197, 64
          %s199 = scalar_lea.vmem [#allocation5], %s198
          %s200 = ssub.s32 %s15, 1
          %p201 = scmp.gt.s32.totalorder %s200, 0
          %s202 = scalar_select %p201, %s200, 0
          %s204 = ssub.s32 1024, 1024
          %205 = vsyncadd %s196, %s204
          %s206 = smul.addr %s202, 64
          %s207 = scalar_lea.hbm %s2, %s206
          %s208 = sshll.u32 %s199, 4
          %s209 = int_to_ptr.vmem [resolvable:$true] %s208
          %214 = dma.hbm_to_vmem [thread:$0]  %s207, 1024, %s209, %s196, 64, 64, 4
        $region28: #{linear_forward.1} parent=15 // pred_fallthru
          _
      $region16: #{linear_forward.1} parent=5 // pred_fallthru
        _
      %p215 = scmp.le.s32.totalorder 1, %s15
      %p216 = scmp.lt.s32.totalorder %s15, 3
      %p217 = pnand %p215, %p216
      %p218 = pneg %p217
      // Predicated region
      $region29: #{linear_forward.1} parent=5 // pred_check
        _
      $region30: #{linear_forward.1} parent=5 // pred_check_branch
        %220 = sbr.rel (%p217) target = $region32
      $region31: #{linear_forward.1} parent=5 // pred_region
        %s221 = ssub.s32 %s15, 1
        %s222 = sand.u32 %s62, 1
        %s223 = scalar_lea.sflag [#allocation4], %s222
        %s224 = sand.u32 %s62, 1
        %s225 = smul.addr %s224, 64
        %s226 = scalar_lea.vmem [#allocation3], %s225
        // Predicated region
        $region33: #{linear_forward.1} parent=31 // pred_check
          %p227 = pneg %p75
        $region34: #{linear_forward.1} parent=31 // pred_check_branch
          %229 = sbr.rel (%p227) target = $region36
        $region35: #{linear_forward.1} parent=31 // pred_region
          %230 = dma.done %s223, 1024
        $region36: #{linear_forward.1} parent=31 // pred_fallthru
          _
        %s231 = sand.u32 %s94, 1
        %s232 = scalar_lea.sflag [#allocation6], %s231
        %s233 = sand.u32 %s94, 1
        %s234 = smul.addr %s233, 64
        %s235 = scalar_lea.vmem [#allocation5], %s234
        // Predicated region
        $region37: #{linear_forward.1} parent=31 // pred_check
          %p236 = pneg %p107
        $region38: #{linear_forward.1} parent=31 // pred_check_branch
          %238 = sbr.rel (%p236) target = $region40
        $region39: #{linear_forward.1} parent=31 // pred_region
          %239 = dma.done %s232, 1024
        $region40: #{linear_forward.1} parent=31 // pred_fallthru
          _
        %p240 = scmp.lt.s32.totalorder %s20, 0
        %s241 = scalar_select %p240, %s20, 0
        %p242 = scmp.lt.s32.totalorder %s241, 0
        %s243 = scalar_select %p242, %s241, 0
        %s244 = smul.addr %s243, 4
        %s245 = scalar_lea.vmem %s0, %s244
        %p246 = pneg %p45
        %p247 = pneg %p42
        %s248 = sand.u32 %s62, 1
        %s249 = scalar_lea.sflag [#allocation4], %s248
        %s250 = sand.u32 %s62, 1
        %s251 = smul.addr %s250, 64
        %s252 = scalar_lea.vmem [#allocation3], %s251
        %p253 = pneg %p75
        %p254 = pneg %p72
        %s255 = sand.u32 %s94, 1
        %s256 = scalar_lea.sflag [#allocation6], %s255
        %s257 = sand.u32 %s94, 1
        %s258 = smul.addr %s257, 64
        %s259 = scalar_lea.vmem [#allocation5], %s258
        %p260 = pneg %p107
        %p261 = pneg %p104
        %p262 = pneg %p139
        %p263 = pneg %p136
        %s264 = ssub.s32 %s20, 1
        %p265 = scmp.gt.s32.totalorder %s264, 0
        %s266 = scalar_select %p265, %s264, 0
        %p267 = scmp.lt.s32.totalorder %s266, 0
        %s268 = scalar_select %p267, %s266, 0
        %s269 = smul.addr %s268, 8
        %s270 = scalar_lea.vmem %s3, %s269
        %p271 = scmp.lt.s32.totalorder %s20, 0
        %s272 = scalar_select %p271, %s20, 0
        %p273 = scmp.lt.s32.totalorder %s272, 0
        %s274 = scalar_select %p273, %s272, 0
        %s275 = smul.addr %s274, 4
        %s276 = scalar_lea.vmem %s0, %s275
        %p277 = scmp.lt.s32.totalorder %s20, 0
        %s278 = scalar_select %p277, %s20, 0
        %p279 = scmp.lt.s32.totalorder %s20, 0
        %s280 = scalar_select %p279, %s20, 0
        %s281 = smul.u32 16, %s280
        %s282 = ssub.s32 %s20, 1
        %p283 = scmp.gt.s32.totalorder %s282, 0
        %s284 = scalar_select %p283, %s282, 0
        %s285 = ssub.s32 %s20, 1
        %p286 = scmp.gt.s32.totalorder %s285, 0
        %s287 = scalar_select %p286, %s285, 0
        %p288 = scmp.lt.s32.totalorder %s287, 0
        %s289 = scalar_select %p288, %s287, 0
        %s290 = smul.addr %s289, 8
        %s291 = scalar_lea.vmem %s3, %s290
        %s292 = ssub.s32 %s20, 1
        %p293 = scmp.gt.s32.totalorder %s292, 0
        %s294 = scalar_select %p293, %s292, 0
        %p296 = scmp.eq.s32.totalorder %s20, 0
        // Predicated region
        $region41: #{linear_forward.1} parent=31 // pred_check
          %p297 = pneg %p296
        $region42: #{linear_forward.1} parent=31 // pred_check_branch
          %299 = sbr.rel (%p297) target = $region44
        $region43: #{linear_forward.1} parent=31 // pred_region
          %300 = vst [vmem:[#allocation2] sm:$0xff] 0.0
          %301 = vst [vmem:[#allocation2 + $0x8] sm:$0xff] 0.0
        $region44: #{linear_forward.1} parent=31 // pred_fallthru
          _
        %p302 = scmp.lt.s32.totalorder %s20, 1
        // Predicated region
        $region45: #{linear_forward.1} parent=31 // pred_check
          %p303 = pneg %p302
        $region46: #{linear_forward.1} parent=31 // pred_check_branch
          %305 = sbr.rel (%p303) target = $region48
        $region47: #{linear_forward.1} parent=31 // pred_region
          %v306 = vld [vmem:[#allocation2] sm:$0xff]
          %v307 = vld [vmem:[#allocation2 + $0x8] sm:$0xff]
          %v308 = vld [vmem:[%s276] sm:$0xf]
          %v309 = vld [vmem:[%s276 + $0x4] sm:$0xf]
          %v310 = vld [vmem:[%s226] sm:$0xf]
          %v311 = vld [vmem:[%s226 + $0x4] sm:$0xf]
          %v312 = vld [vmem:[%s226 + $0x8] sm:$0xf]
          %v313 = vld [vmem:[%s226 + $0xc] sm:$0xf]
          %v314 = vld [vmem:[%s226 + $0x10] sm:$0xf]
          %v315 = vld [vmem:[%s226 + $0x14] sm:$0xf]
          %v316 = vld [vmem:[%s226 + $0x18] sm:$0xf]
          %v317 = vld [vmem:[%s226 + $0x1c] sm:$0xf]
          %v318 = vld [vmem:[%s226 + $0x20] sm:$0xf]
          %v319 = vld [vmem:[%s226 + $0x24] sm:$0xf]
          %v320 = vld [vmem:[%s226 + $0x28] sm:$0xf]
          %v321 = vld [vmem:[%s226 + $0x2c] sm:$0xf]
          %v322 = vld [vmem:[%s226 + $0x30] sm:$0xf]
          %v323 = vld [vmem:[%s226 + $0x34] sm:$0xf]
          %v324 = vld [vmem:[%s226 + $0x38] sm:$0xf]
          %v325 = vld [vmem:[%s226 + $0x3c] sm:$0xf]
          %v328 = vunpack.c.l.b16 %v308
          %v329 = vunpack.c.l.b16 %v309
          %v330 = vpack.c.b16 %v329, %v328
          %v348 = vunpack.c.l.b16 %v310
          %v349 = vunpack.c.l.b16 %v311
          %v350 = vunpack.c.l.b16 %v312
          %v351 = vunpack.c.l.b16 %v313
          %v352 = vunpack.c.l.b16 %v314
          %v353 = vunpack.c.l.b16 %v315
          %v354 = vunpack.c.l.b16 %v316
          %v355 = vunpack.c.l.b16 %v317
          %v356 = vunpack.c.l.b16 %v318
          %v357 = vunpack.c.l.b16 %v319
          %v358 = vunpack.c.l.b16 %v320
          %v359 = vunpack.c.l.b16 %v321
          %v360 = vunpack.c.l.b16 %v322
          %v361 = vunpack.c.l.b16 %v323
          %v362 = vunpack.c.l.b16 %v324
          %v363 = vunpack.c.l.b16 %v325
          %v364 = vpack.c.b16 %v349, %v348
          %v365 = vpack.c.b16 %v351, %v350
          %v366 = vpack.c.b16 %v353, %v352
          %v367 = vpack.c.b16 %v355, %v354
          %v368 = vpack.c.b16 %v357, %v356
          %v369 = vpack.c.b16 %v359, %v358
          %v370 = vpack.c.b16 %v361, %v360
          %v371 = vpack.c.b16 %v363, %v362
          %380 = vmatprep.subr.bf16.mxu0 0
          %381 = vmatpush1.bf16.msra.mxu0 %v364
          %382 = vmatprep.subr.bf16.mxu0 0
          %383 = vmatpush1.bf16.msra.mxu0 %v365
          %384 = vmatprep.subr.bf16.mxu0 0
          %385 = vmatpush1.bf16.msra.mxu0 %v366
          %386 = vmatprep.subr.bf16.mxu0 0
          %387 = vmatpush1.bf16.msra.mxu0 %v367
          %388 = vmatprep.subr.bf16.mxu0 0
          %389 = vmatpush1.bf16.msra.mxu0 %v368
          %390 = vmatprep.subr.bf16.mxu0 0
          %391 = vmatpush1.bf16.msra.mxu0 %v369
          %392 = vmatprep.subr.bf16.mxu0 0
          %393 = vmatpush1.bf16.msra.mxu0 %v370
          %394 = vmatprep.subr.bf16.mxu0 0
          %395 = vmatpush1.bf16.msra.mxu0 %v371
          %396 = vmatprep.subr.bf16.mxu0 0
          %397 = vmatpush1.bf16.msra.mxu0 0
          %398 = vmatprep.subr.bf16.mxu0 0
          %399 = vmatpush1.bf16.msra.mxu0 0
          %400 = vmatprep.subr.bf16.mxu0 0
          %401 = vmatpush1.bf16.msra.mxu0 0
          %402 = vmatprep.subr.bf16.mxu0 0
          %403 = vmatpush1.bf16.msra.mxu0 0
          %404 = vmatprep.subr.bf16.mxu0 0
          %405 = vmatpush1.bf16.msra.mxu0 0
          %406 = vmatprep.subr.bf16.mxu0 0
          %407 = vmatpush1.bf16.msra.mxu0 0
          %408 = vmatprep.subr.bf16.mxu0 0
          %409 = vmatpush1.bf16.msra.mxu0 0
          %410 = vmatprep.subr.bf16.mxu0 0
          %411 = vmatpush1.bf16.msra.mxu0 0
          %412 = vmatprep.mubr.bf16.mxu0 0
          %413 = vmatmul.mubr.bf16.gmra.mrb[0].mxu0 %v330
          %v414 = vpop.f32.mrb[0].mxu0
          %v415 = vadd.f32 0.0, %v414
          %v416 = vpop.f32.mrb[0].mxu0
          %v417 = vpop.f32.mrb[0].mxu0
          %v418 = vadd.f32 0.0, %v417
          %v419 = vpop.f32.mrb[0].mxu0
          %420 = vdwg.mxu0
          %v421 = vadd.f32 %v306, %v415
          %v422 = vadd.f32 %v307, %v418
          %423 = vst [vmem:[#allocation2] sm:$0xff] %v421
          %424 = vst [vmem:[#allocation2 + $0x8] sm:$0xff] %v422
        $region48: #{linear_forward.1} parent=31 // pred_fallthru
          _
        %p425 = scmp.ge.s32.totalorder %s20, 1
        // Predicated region
        $region49: #{linear_forward.1} parent=31 // pred_check
          %p426 = pneg %p425
        $region50: #{linear_forward.1} parent=31 // pred_check_branch
          %428 = sbr.rel (%p426) target = $region52
        $region51: #{linear_forward.1} parent=31 // pred_region
          %v429 = vld [vmem:[#allocation2] sm:$0xff]
          %v430 = vld [vmem:[#allocation2 + $0x8] sm:$0xff]
          %v431 = vpack.c.bf16 %v430, %v429
          %v432 = vld [vmem:[%s235] sm:$0xf]
          %v433 = vld [vmem:[%s235 + $0x4] sm:$0xf]
          %v434 = vld [vmem:[%s235 + $0x8] sm:$0xf]
          %v435 = vld [vmem:[%s235 + $0xc] sm:$0xf]
          %v436 = vld [vmem:[%s235 + $0x10] sm:$0xf]
          %v437 = vld [vmem:[%s235 + $0x14] sm:$0xf]
          %v438 = vld [vmem:[%s235 + $0x18] sm:$0xf]
          %v439 = vld [vmem:[%s235 + $0x1c] sm:$0xf]
          %v440 = vld [vmem:[%s235 + $0x20] sm:$0xf]
          %v441 = vld [vmem:[%s235 + $0x24] sm:$0xf]
          %v442 = vld [vmem:[%s235 + $0x28] sm:$0xf]
          %v443 = vld [vmem:[%s235 + $0x2c] sm:$0xf]
          %v444 = vld [vmem:[%s235 + $0x30] sm:$0xf]
          %v445 = vld [vmem:[%s235 + $0x34] sm:$0xf]
          %v446 = vld [vmem:[%s235 + $0x38] sm:$0xf]
          %v447 = vld [vmem:[%s235 + $0x3c] sm:$0xf]
          %v464 = vunpack.c.l.b16 %v432
          %v465 = vunpack.c.l.b16 %v433
          %v466 = vunpack.c.l.b16 %v434
          %v467 = vunpack.c.l.b16 %v435
          %v468 = vunpack.c.l.b16 %v436
          %v469 = vunpack.c.l.b16 %v437
          %v470 = vunpack.c.l.b16 %v438
          %v471 = vunpack.c.l.b16 %v439
          %v472 = vunpack.c.l.b16 %v440
          %v473 = vunpack.c.l.b16 %v441
          %v474 = vunpack.c.l.b16 %v442
          %v475 = vunpack.c.l.b16 %v443
          %v476 = vunpack.c.l.b16 %v444
          %v477 = vunpack.c.l.b16 %v445
          %v478 = vunpack.c.l.b16 %v446
          %v479 = vunpack.c.l.b16 %v447
          %v480 = vpack.c.b16 %v465, %v464
          %v481 = vpack.c.b16 %v467, %v466
          %v482 = vpack.c.b16 %v469, %v468
          %v483 = vpack.c.b16 %v471, %v470
          %v484 = vpack.c.b16 %v473, %v472
          %v485 = vpack.c.b16 %v475, %v474
          %v486 = vpack.c.b16 %v477, %v476
          %v487 = vpack.c.b16 %v479, %v478
          %496 = vmatprep.subr.bf16.mxu0 0
          %497 = vmatpush1.bf16.msra.mxu0 %v480
          %498 = vmatprep.subr.bf16.mxu0 0
          %499 = vmatpush1.bf16.msra.mxu0 %v481
          %500 = vmatprep.subr.bf16.mxu0 0
          %501 = vmatpush1.bf16.msra.mxu0 %v482
          %502 = vmatprep.subr.bf16.mxu0 0
          %503 = vmatpush1.bf16.msra.mxu0 %v483
          %504 = vmatprep.subr.bf16.mxu0 0
          %505 = vmatpush1.bf16.msra.mxu0 %v484
          %506 = vmatprep.subr.bf16.mxu0 0
          %507 = vmatpush1.bf16.msra.mxu0 %v485
          %508 = vmatprep.subr.bf16.mxu0 0
          %509 = vmatpush1.bf16.msra.mxu0 %v486
          %510 = vmatprep.subr.bf16.mxu0 0
          %511 = vmatpush1.bf16.msra.mxu0 %v487
          %512 = vmatprep.subr.bf16.mxu0 0
          %513 = vmatpush1.bf16.msra.mxu0 0
          %514 = vmatprep.subr.bf16.mxu0 0
          %515 = vmatpush1.bf16.msra.mxu0 0
          %516 = vmatprep.subr.bf16.mxu0 0
          %517 = vmatpush1.bf16.msra.mxu0 0
          %518 = vmatprep.subr.bf16.mxu0 0
          %519 = vmatpush1.bf16.msra.mxu0 0
          %520 = vmatprep.subr.bf16.mxu0 0
          %521 = vmatpush1.bf16.msra.mxu0 0
          %522 = vmatprep.subr.bf16.mxu0 0
          %523 = vmatpush1.bf16.msra.mxu0 0
          %524 = vmatprep.subr.bf16.mxu0 0
          %525 = vmatpush1.bf16.msra.mxu0 0
          %526 = vmatprep.subr.bf16.mxu0 0
          %527 = vmatpush1.bf16.msra.mxu0 0
          %528 = vmatprep.mubr.bf16.mxu0 0
          %529 = vmatmul.mubr.bf16.gmra.mrb[0].mxu0 %v431
          %v530 = vpop.f32.mrb[0].mxu0
          %v531 = vadd.f32 0.0, %v530
          %v532 = vpop.f32.mrb[0].mxu0
          %v533 = vpop.f32.mrb[0].mxu0
          %v534 = vadd.f32 0.0, %v533
          %v535 = vpop.f32.mrb[0].mxu0
          %536 = vdwg.mxu0
          %537 = vst [vmem:[%s291] sm:$0xff] %v531
          %538 = vst [vmem:[%s291 + $0x8] sm:$0xff] %v534
        $region52: #{linear_forward.1} parent=31 // pred_fallthru
          _
        %s539 = ssub.s32 %s20, 1
        %p540 = scmp.gt.s32.totalorder %s539, 0
        %s541 = scalar_select %p540, %s539, 0
        %p542 = scmp.lt.s32.totalorder %s541, 0
        %s543 = scalar_select %p542, %s541, 0
        %s544 = smul.addr %s543, 8
        %s545 = scalar_lea.vmem %s3, %s544
        // Predicated region
        $region53: #{linear_forward.1} parent=31 // pred_check
          %p546 = pneg %p136
        $region54: #{linear_forward.1} parent=31 // pred_check_branch
          %548 = sbr.rel (%p546) target = $region56
        $region55: #{linear_forward.1} parent=31 // pred_region
          %s549 = ssub.s32 %s20, 1
          %p550 = scmp.gt.s32.totalorder %s549, 0
          %s551 = scalar_select %p550, %s549, 0
        $region56: #{linear_forward.1} parent=31 // pred_fallthru
          _
      $region32: #{linear_forward.1} parent=5 // pred_fallthru
        _
      %p552 = scmp.le.s32.totalorder 2, %s15
      // Predicated region
      $region57: #{linear_forward.1} parent=5 // pred_check
        %p553 = pneg %p552
      $region58: #{linear_forward.1} parent=5 // pred_check_branch
        %555 = sbr.rel (%p553) target = $region60
      $region59: #{linear_forward.1} parent=5 // pred_region
        %s556 = ssub.s32 %s15, 2
        // Predicated region
        $region61: #{linear_forward.1} parent=59 // pred_check
          %p557 = pneg %p142
        $region62: #{linear_forward.1} parent=59 // pred_check_branch
          %559 = sbr.rel (%p557) target = $region64
        $region63: #{linear_forward.1} parent=59 // pred_region
          %s560 = ssub.s32 %s21, 1
          %p561 = scmp.gt.s32.totalorder %s560, 0
          %s562 = scalar_select %p561, %s560, 0
          %p563 = scmp.lt.s32.totalorder %s562, 0
          %s564 = scalar_select %p563, %s562, 0
          %s565 = smul.addr %s564, 8
          %s566 = scalar_lea.vmem %s3, %s565
        $region64: #{linear_forward.1} parent=59 // pred_fallthru
          _
      $region60: #{linear_forward.1} parent=5 // pred_fallthru
        _
    $region6: #{linear_forward.1} parent=1 // loop_footer
      %s19 = sadd.s32 1, %s15
    $region7: #{linear_forward.1} parent=1 // loop_footer_branch
      %14 = sbr.rel target = $region3
    $region8: #{linear_forward.1} parent=1 // loop_exit
      _
    %567 = vsyncpa [#allocation4], 1
    %s568 = scalar_lea.sflag [#allocation4], 1
    %569 = vsyncpa %s568, 1
    %570 = vsyncpa [#allocation6], 1
    %s571 = scalar_lea.sflag [#allocation6], 1
    %572 = vsyncpa %s571, 1

</llo_original>
